<compile_context>
chip_gen: v5e
topology: v5e:2x2
jax: 0.10.0
libtpu: 0.0.40
codegen_flags: <defaults>
</compile_context>

<pallas_src>
import jax
import jax.numpy as jnp
from jax.experimental import pallas as pl
from jax.experimental.pallas import tpu as pltpu


def _excitation_kernel(x_ref, w1_ref, b1_ref, w2_ref, b2_ref, o_ref):
    # x_ref / o_ref : (C, thw)   channels in sublanes, spatial tile in lanes
    # w1_ref        : (Cr, C)    conv1 weight (1x1 kernel squeezed)
    # b1_ref        : (Cr, 1)
    # w2_ref        : (C, Cr)    conv2 weight
    # b2_ref        : (C, 1)
    x = x_ref[...]                                    # keep input dtype (f32 / bf16)

    # conv1 + ReLU:  (Cr, C) @ (C, thw) on the MXU, f32 accumulation.
    h = jnp.dot(w1_ref[...], x, preferred_element_type=jnp.float32)   # (Cr, thw)
    h = jnp.maximum(h + b1_ref[...], 0.0)

    # conv2:  (C, Cr) @ (Cr, thw) on the MXU.
    s = jnp.dot(w2_ref[...], h, preferred_element_type=jnp.float32)   # (C, thw)
    s = s + b2_ref[...]

    # sigmoid(s) = 1 / (1 + exp(-s)); exp and reciprocal both go to the EUP,
    # avoiding a full-tile VALU divide.
    gate = pl.reciprocal(1.0 + jnp.exp(-s), approx=True)

    # Final scaling in the input dtype (no blanket f32 upcast of x).
    o_ref[...] = (x * gate.astype(x.dtype)).astype(o_ref.dtype)


def _pick_spatial_tile(HW, C, itemsize, N, vmem_limit_bytes):
    """Lane-dense spatial tile: big enough to amortize the ~0.35us/step
    overhead, small enough that the pipeline buffers + f32 body temporaries
    fit VMEM, and small enough to leave >= ~8 total grid blocks for 2-TC
    (v7x) sharding when N is small."""
    # Per lane of tile: 2x double-buffered x + 2x double-buffered out (input
    # dtype) + ~4 tile-sized f32 temporaries inside the body (h/s/gate/result).
    per_lane_bytes = C * (4 * itemsize + 4 * 4)
    cap = int(0.6 * vmem_limit_bytes) // max(per_lane_bytes, 1)
    cap = max(128, (cap // 128) * 128)      # lane-dense; floor at one vreg width
    # Aim for >= 8 total grid blocks (N * spatial tiles) when batch is small.
    min_tiles = -(-8 // max(N, 1))          # ceil(8 / N)
    want = -(-HW // min_tiles)              # ceil(HW / min_tiles)
    want = max(128, ((want + 127) // 128) * 128)
    thw = min(cap, want)
    if thw >= HW:
        return HW                           # single full-extent spatial block
    return thw


def excitation_pallas(x_nchw, w1, b1, w2, b2):
    """x_nchw: (N, C, H, W); w1: (Cr, C) conv1 weight (1x1 kernel squeezed);
    b1: (Cr,); w2: (C, Cr); b2: (C,). Returns (N, C, H, W)."""
    N, C, H, W = x_nchw.shape
    Cr = w1.shape[0]
    HW = H * W

    # NCHW processed directly as (N, C, H*W): metadata-only reshape; no
    # transpose, no pad, no slice -> a single HBM read of x and write of y.
    x3 = x_nchw.reshape(N, C, HW)

    # Per-generation VMEM budget: 128 MiB on v5e/v6e -> 96 MiB limit,
    # 64 MiB on v7x -> 48 MiB limit.  Fallback assumes the smallest (v7x).
    try:
        vmem_phys = pltpu.get_tpu_info().vmem_capacity_bytes
    except Exception:
        vmem_phys = 64 * 1024 * 1024
    vmem_limit = min(max(int(vmem_phys) * 3 // 4, 32 * 1024 * 1024),
                     96 * 1024 * 1024)

    itemsize = jnp.dtype(x_nchw.dtype).itemsize
    thw = _pick_spatial_tile(HW, C, itemsize, N, vmem_limit)
    n_spatial = pl.cdiv(HW, thw)            # final partial block is masked

    w1m = w1.reshape(Cr, C)
    b1m = b1.reshape(Cr, 1)
    w2m = w2.reshape(C, Cr)
    b2m = b2.reshape(C, 1)

    out3 = pl.pallas_call(
        _excitation_kernel,
        out_shape=jax.ShapeDtypeStruct((N, C, HW), x_nchw.dtype),
        grid_spec=pltpu.PrefetchScalarGridSpec(
            num_scalar_prefetch=0,
            grid=(N, n_spatial),
            in_specs=[
                pl.BlockSpec((None, C, thw), lambda n, j: (n, 0, j)),
                pl.BlockSpec((Cr, C), lambda n, j: (0, 0)),
                pl.BlockSpec((Cr, 1), lambda n, j: (0, 0)),
                pl.BlockSpec((C, Cr), lambda n, j: (0, 0)),
                pl.BlockSpec((C, 1), lambda n, j: (0, 0)),
            ],
            out_specs=pl.BlockSpec((None, C, thw), lambda n, j: (n, 0, j)),
        ),
        compiler_params=pltpu.CompilerParams(
            dimension_semantics=("parallel", "parallel"),
            vmem_limit_bytes=vmem_limit,
        ),
    )(x3, w1m, b1m, w2m, b2m)

    return out3.reshape(N, C, H, W)


def excitation_reference(x, w1, b1, w2, b2):
    # pure-JAX reference of the PyTorch forward (1x1 convs as matmuls)
    N, C, H, W = x.shape
    x2d = jnp.transpose(x, (0, 2, 3, 1)).reshape(-1, C).astype(jnp.float32)
    h = jnp.maximum(x2d @ w1.T + b1, 0.0)
    gate = jax.nn.sigmoid(h @ w2.T + b2)
    y = x2d * gate
    return jnp.transpose(y.reshape(N, H, W, C), (0, 3, 1, 2)).astype(x.dtype)


if __name__ == "__main__":
    # Module config: channel=32, reduction=16 -> hidden = 2
    N, C, H, W = 2, 32, 16, 16
    reduction = 16
    Cr = C // reduction

    key = jax.random.PRNGKey(0)
    kx, k1, k2, k3, k4 = jax.random.split(key, 5)

    x = jax.random.normal(kx, (N, C, H, W), dtype=jnp.float32)
    # Conv2d(channel, channel//reduction, 1): weight (Cr, C, 1, 1) -> (Cr, C)
    w1 = jax.random.normal(k1, (Cr, C), dtype=jnp.float32) * 0.1
    b1 = jax.random.normal(k2, (Cr,), dtype=jnp.float32) * 0.1
    # Conv2d(channel//reduction, channel, 1): weight (C, Cr, 1, 1) -> (C, Cr)
    w2 = jax.random.normal(k3, (C, Cr), dtype=jnp.float32) * 0.1
    b2 = jax.random.normal(k4, (C,), dtype=jnp.float32) * 0.1

    y = excitation_pallas(x, w1, b1, w2, b2)
    jax.block_until_ready(y)

    y_ref = excitation_reference(x, w1, b1, w2, b2)
    assert y.shape == x.shape
    # tolerance loosened slightly: the gate uses the EUP approx reciprocal
    assert jnp.allclose(y, y_ref, atol=5e-3, rtol=5e-3), "mismatch vs reference"

    print("KERNEL_OK")
</pallas_src>

<mosaic_0001>
module attributes {stable_mosaic.version = 11 : i64} {
  func.func @_excitation_kernel(%arg0: i32, %arg1: i32, %arg2: memref<1x32x128xf32, #tpu.memory_space<vmem>>, %arg3: memref<2x32xf32, #tpu.memory_space<vmem>>, %arg4: memref<2x1xf32, #tpu.memory_space<vmem>>, %arg5: memref<32x2xf32, #tpu.memory_space<vmem>>, %arg6: memref<32x1xf32, #tpu.memory_space<vmem>>, %arg7: memref<1x32x128xf32, #tpu.memory_space<vmem>>) attributes {dimension_semantics = [#tpu.dimension_semantics<parallel>, #tpu.dimension_semantics<parallel>], iteration_bounds = array<i64: 2, 2>, scalar_prefetch = 0 : i64, scratch_operands = 0 : i64, tpu.core_type = #tpu.core_type<tc>, window_params = [{transform_indices = @transform_0, window_bounds = array<i64: 1, 32, 128>}, {pipeline_mode = #tpu.pipeline_mode<synchronous>, transform_indices = @transform_1, window_bounds = array<i64: 2, 32>}, {pipeline_mode = #tpu.pipeline_mode<synchronous>, transform_indices = @transform_2, window_bounds = array<i64: 2, 1>}, {pipeline_mode = #tpu.pipeline_mode<synchronous>, transform_indices = @transform_3, window_bounds = array<i64: 32, 2>}, {pipeline_mode = #tpu.pipeline_mode<synchronous>, transform_indices = @transform_4, window_bounds = array<i64: 32, 1>}, {transform_indices = @transform_5, window_bounds = array<i64: 1, 32, 128>}]} {
    %c0 = arith.constant 0 : index
    %c0_0 = arith.constant 0 : index
    %c0_1 = arith.constant 0 : index
    %0 = vector.load %arg2[%c0, %c0_0, %c0_1] : memref<1x32x128xf32, #tpu.memory_space<vmem>>, vector<1x32x128xf32>
    %1 = vector.shape_cast %0 : vector<1x32x128xf32> to vector<32x128xf32>
    %c0_2 = arith.constant 0 : index
    %c0_3 = arith.constant 0 : index
    %2 = vector.load %arg3[%c0_2, %c0_3] : memref<2x32xf32, #tpu.memory_space<vmem>>, vector<2x32xf32>
    %cst = arith.constant dense<0.000000e+00> : vector<2x128xf32>
    %3 = tpu.matmul %2, %1, %cst {dimension_numbers = #tpu.dot_dimension_numbers<[1], [0], [0], [1], [0, 0, 1, 1], [], []>} : vector<2x32xf32>, vector<32x128xf32>, vector<2x128xf32> -> vector<2x128xf32>
    %c0_4 = arith.constant 0 : index
    %c0_5 = arith.constant 0 : index
    %4 = vector.load %arg4[%c0_4, %c0_5] : memref<2x1xf32, #tpu.memory_space<vmem>>, vector<2x1xf32>
    %5 = vector.broadcast %4 : vector<2x1xf32> to vector<2x128xf32>
    %6 = arith.addf %3, %5 : vector<2x128xf32>
    %cst_6 = arith.constant 0.000000e+00 : f32
    %7 = vector.broadcast %cst_6 : f32 to vector<2x128xf32>
    %8 = arith.maximumf %6, %7 : vector<2x128xf32>
    %c0_7 = arith.constant 0 : index
    %c0_8 = arith.constant 0 : index
    %9 = vector.load %arg5[%c0_7, %c0_8] : memref<32x2xf32, #tpu.memory_space<vmem>>, vector<32x2xf32>
    %cst_9 = arith.constant dense<0.000000e+00> : vector<32x128xf32>
    %10 = tpu.matmul %9, %8, %cst_9 {dimension_numbers = #tpu.dot_dimension_numbers<[1], [0], [0], [1], [0, 0, 1, 1], [], []>} : vector<32x2xf32>, vector<2x128xf32>, vector<32x128xf32> -> vector<32x128xf32>
    %c0_10 = arith.constant 0 : index
    %c0_11 = arith.constant 0 : index
    %11 = vector.load %arg6[%c0_10, %c0_11] : memref<32x1xf32, #tpu.memory_space<vmem>>, vector<32x1xf32>
    %12 = vector.broadcast %11 : vector<32x1xf32> to vector<32x128xf32>
    %13 = arith.addf %10, %12 : vector<32x128xf32>
    %cst_12 = arith.constant 0.000000e+00 : f32
    %14 = vector.broadcast %cst_12 : f32 to vector<32x128xf32>
    %15 = arith.subf %14, %13 : vector<32x128xf32>
    %16 = math.exp %15 : vector<32x128xf32>
    %cst_13 = arith.constant 1.000000e+00 : f32
    %17 = vector.broadcast %cst_13 : f32 to vector<32x128xf32>
    %18 = arith.addf %17, %16 : vector<32x128xf32>
    %19 = tpu.reciprocal %18 {approx = true} : vector<32x128xf32> -> vector<32x128xf32>
    %20 = arith.mulf %1, %19 : vector<32x128xf32>
    %c0_14 = arith.constant 0 : index
    %c0_15 = arith.constant 0 : index
    %c0_16 = arith.constant 0 : index
    %21 = vector.load %arg7[%c0_14, %c0_15, %c0_16] : memref<1x32x128xf32, #tpu.memory_space<vmem>>, vector<1x32x128xf32>
    %22 = vector.shape_cast %21 : vector<1x32x128xf32> to vector<32x128xf32>
    %23 = vector.shape_cast %20 : vector<32x128xf32> to vector<1x32x128xf32>
    tpu.vector_store %arg7[%c0_14, %c0_15, %c0_16], %23 {strides = array<i32>} : memref<1x32x128xf32, #tpu.memory_space<vmem>>, vector<1x32x128xf32>,
    return
  }
  func.func @transform_0(%arg0: i32, %arg1: i32) -> (i32, i32, i32) {
    %c0_i32 = arith.constant 0 : i32
    %c0_i32_0 = arith.constant 0 : i32
    return %arg0, %c0_i32, %arg1 : i32, i32, i32
  }
  func.func @transform_1(%arg0: i32, %arg1: i32) -> (i32, i32) {
    %c0_i32 = arith.constant 0 : i32
    %c0_i32_0 = arith.constant 0 : i32
    %c0_i32_1 = arith.constant 0 : i32
    return %c0_i32, %c0_i32_0 : i32, i32
  }
  func.func @transform_2(%arg0: i32, %arg1: i32) -> (i32, i32) {
    %c0_i32 = arith.constant 0 : i32
    %c0_i32_0 = arith.constant 0 : i32
    %c0_i32_1 = arith.constant 0 : i32
    return %c0_i32, %c0_i32_0 : i32, i32
  }
  func.func @transform_3(%arg0: i32, %arg1: i32) -> (i32, i32) {
    %c0_i32 = arith.constant 0 : i32
    %c0_i32_0 = arith.constant 0 : i32
    %c0_i32_1 = arith.constant 0 : i32
    return %c0_i32, %c0_i32_0 : i32, i32
  }
  func.func @transform_4(%arg0: i32, %arg1: i32) -> (i32, i32) {
    %c0_i32 = arith.constant 0 : i32
    %c0_i32_0 = arith.constant 0 : i32
    %c0_i32_1 = arith.constant 0 : i32
    return %c0_i32, %c0_i32_0 : i32, i32
  }
  func.func @transform_5(%arg0: i32, %arg1: i32) -> (i32, i32, i32) {
    %c0_i32 = arith.constant 0 : i32
    %c0_i32_0 = arith.constant 0 : i32
    return %arg0, %c0_i32, %arg1 : i32, i32, i32
  }
}

</mosaic_0001>

<llo_original>
// kernel: tpu_custom_call.1
$region0: #{tpu_custom_call.1}
  #allocation0 [shape = 'u32[]', space=smem, size = 0x4, offset = 0x4, fixed_abs, tag = 'smem constant byte address 0x4 - core index']
  #allocation1 [shape = 'u32[72,128]{1,0:T(1,128)}', space=vmem, size = 0x9000, scoped, tag = 'internal scratch']
  %s0 = inlined_call_operand.hbm [shape: f32[2,32,256], index: 0, kind: input, shape index: {}]
  %s1 = inlined_call_operand.vmem [shape: f32[2,32], index: 1, kind: input, shape index: {}]
  %s2 = inlined_call_operand.vmem [shape: f32[2,1], index: 2, kind: input, shape index: {}]
  %s3 = inlined_call_operand.vmem [shape: f32[32,2], index: 3, kind: input, shape index: {}]
  %s4 = inlined_call_operand.vmem [shape: f32[32,1], index: 4, kind: input, shape index: {}]
  %s5 = inlined_call_operand.hbm [shape: f32[2,32,256], index: 5, kind: output, shape index: {}]
  %s6 = sld [smem:[#allocation0]]
  $region57: #{tpu_custom_call.1} parent=0
    _
  %s8 = ssub.s32 1, %s6
  %s9 = scalar_select 0, %s8, %s6
  $region1: #{tpu_custom_call.1} parent=0
    #allocation2 [shape = 'u8[32768]{0}', space=vmem, size = 0x8000, scoped, tag = 'input window, operand 0']
    #allocation3 [shape = 's32[2]{0}', space=sflag, size = 0x8, scoped, tag = 'scoped memory for tpu_custom_call.1']
    #allocation4 [shape = 's32[2]{0}', space=sflag, size = 0x8, scoped, tag = 'scoped memory for tpu_custom_call.1']
    #allocation5 [shape = 'u8[32768]{0}', space=vmem, size = 0x8000, scoped, tag = 'output window, operand 0']
    %10 = vsyncpa [#allocation3], 0
    %s11 = scalar_lea.sflag [#allocation3], 1
    %12 = vsyncpa %s11, 0
    %13 = vsyncpa [#allocation4], 0
    %s14 = scalar_lea.sflag [#allocation4], 1
    %15 = vsyncpa %s14, 0
    loop: start=0, step=1, limit=6
    $region2: #{tpu_custom_call.1} parent=1 // loop_pre_header
      _
    $region3: #{tpu_custom_call.1} parent=1 // loop_header
      %s17 = sphi 0, %s21
      %p18 = scmp.ge.s32.totalorder %s17, 6
      %s24 = sphi 0, %s36
      %s25 = sphi 0, %s32
      %s26 = sphi 0, %s24
      %s27 = sphi 0, %s25
      %s28 = sphi 0, %s26
      %s29 = sphi 0, %s27
      %s41 = sphi 0, %s43
      %s44 = sphi 0, %s41
      %s45 = sphi 0, %s44
      %s61 = sphi 0, %s45
      %s65 = sphi 0, %s65
      %s67 = sphi 0, %s65
      %s68 = sphi 0, %s67
      %s82 = sphi 0, %s68
      %s86 = sphi 0, %s86
      %s88 = sphi 0, %s86
      %s89 = sphi 0, %s88
      %s103 = sphi 0, %s89
      %s107 = sphi 0, %s107
      %s109 = sphi 0, %s107
      %s110 = sphi 0, %s109
      %s124 = sphi 0, %s110
      %s128 = sphi 0, %s128
      %s130 = sphi 0, %s128
      %s131 = sphi 0, %s130
      %s145 = sphi 0, %s131
      %s153 = sphi 0, %s155
      %s156 = sphi 0, %s153
      %s157 = sphi 0, %s156
      %s173 = sphi 0, %s157
    $region4: #{tpu_custom_call.1} parent=1 // loop_header_branch
      %20 = sbr.rel (%p18) target = $region8
    $region5: #{tpu_custom_call.1} parent=1 // loop_body
      %s22 = ssub.s32 %s17, 1
      %s23 = ssub.s32 %s17, 2
      %s30 = sadd.s32 1, %s25
      %p31 = scmp.ge.s32.totalorder %s30, 2
      %s32 = scalar_select %p31, 0, %s30
      %s33 = sadd.s32 1, %s24
      %s34 = scalar_select %p31, %s33, %s24
      %p35 = scmp.ge.s32.totalorder %s34, 2
      %s36 = scalar_select %p35, 0, %s34
      %s37 = ssub.s32 %s24, %s36
      %s38 = ssub.s32 %s25, %s32
      %s39 = sor.u32 %s37, %s38
      %p40 = scmp.eq.s32.totalorder %s39, 0
      %s42 = sadd.s32 %s41, 1
      %s43 = scalar_select %p40, %s41, %s42
      %p46 = pneg %p40
      %p47 = scmp.eq.s32.totalorder %s17, 3
      %p48 = por %p46, %p47
      %p49 = scmp.ne.s32.totalorder %s41, %s44
      %p50 = scmp.eq.s32.totalorder %s17, 0
      %p51 = por %p49, %p50
      %p52 = scmp.ne.s32.totalorder %s41, %s44
      %p53 = scmp.eq.s32.totalorder %s22, 3
      %p54 = por %p52, %p53
      %p55 = scmp.ne.s32.totalorder %s44, %s45
      %p56 = scmp.eq.s32.totalorder %s22, 0
      %p57 = por %p55, %p56
      %p58 = scmp.ne.s32.totalorder %s44, %s45
      %p59 = scmp.eq.s32.totalorder %s23, 3
      %p60 = por %p58, %p59
      %p62 = scmp.ne.s32.totalorder %s45, %s61
      %p63 = scmp.eq.s32.totalorder %s23, 0
      %p64 = por %p62, %p63
      %s66 = sadd.s32 %s65, 1
      %p69 = scmp.eq.s32.totalorder %s17, 3
      %p70 = scmp.ne.s32.totalorder %s65, %s67
      %p71 = scmp.eq.s32.totalorder %s17, 0
      %p72 = por %p70, %p71
      %p73 = scmp.ne.s32.totalorder %s65, %s67
      %p74 = scmp.eq.s32.totalorder %s22, 3
      %p75 = por %p73, %p74
      %p76 = scmp.ne.s32.totalorder %s67, %s68
      %p77 = scmp.eq.s32.totalorder %s22, 0
      %p78 = por %p76, %p77
      %p79 = scmp.ne.s32.totalorder %s67, %s68
      %p80 = scmp.eq.s32.totalorder %s23, 3
      %p81 = por %p79, %p80
      %p83 = scmp.ne.s32.totalorder %s68, %s82
      %p84 = scmp.eq.s32.totalorder %s23, 0
      %p85 = por %p83, %p84
      %s87 = sadd.s32 %s86, 1
      %p90 = scmp.eq.s32.totalorder %s17, 3
      %p91 = scmp.ne.s32.totalorder %s86, %s88
      %p92 = scmp.eq.s32.totalorder %s17, 0
      %p93 = por %p91, %p92
      %p94 = scmp.ne.s32.totalorder %s86, %s88
      %p95 = scmp.eq.s32.totalorder %s22, 3
      %p96 = por %p94, %p95
      %p97 = scmp.ne.s32.totalorder %s88, %s89
      %p98 = scmp.eq.s32.totalorder %s22, 0
      %p99 = por %p97, %p98
      %p100 = scmp.ne.s32.totalorder %s88, %s89
      %p101 = scmp.eq.s32.totalorder %s23, 3
      %p102 = por %p100, %p101
      %p104 = scmp.ne.s32.totalorder %s89, %s103
      %p105 = scmp.eq.s32.totalorder %s23, 0
      %p106 = por %p104, %p105
      %s108 = sadd.s32 %s107, 1
      %p111 = scmp.eq.s32.totalorder %s17, 3
      %p112 = scmp.ne.s32.totalorder %s107, %s109
      %p113 = scmp.eq.s32.totalorder %s17, 0
      %p114 = por %p112, %p113
      %p115 = scmp.ne.s32.totalorder %s107, %s109
      %p116 = scmp.eq.s32.totalorder %s22, 3
      %p117 = por %p115, %p116
      %p118 = scmp.ne.s32.totalorder %s109, %s110
      %p119 = scmp.eq.s32.totalorder %s22, 0
      %p120 = por %p118, %p119
      %p121 = scmp.ne.s32.totalorder %s109, %s110
      %p122 = scmp.eq.s32.totalorder %s23, 3
      %p123 = por %p121, %p122
      %p125 = scmp.ne.s32.totalorder %s110, %s124
      %p126 = scmp.eq.s32.totalorder %s23, 0
      %p127 = por %p125, %p126
      %s129 = sadd.s32 %s128, 1
      %p132 = scmp.eq.s32.totalorder %s17, 3
      %p133 = scmp.ne.s32.totalorder %s128, %s130
      %p134 = scmp.eq.s32.totalorder %s17, 0
      %p135 = por %p133, %p134
      %p136 = scmp.ne.s32.totalorder %s128, %s130
      %p137 = scmp.eq.s32.totalorder %s22, 3
      %p138 = por %p136, %p137
      %p139 = scmp.ne.s32.totalorder %s130, %s131
      %p140 = scmp.eq.s32.totalorder %s22, 0
      %p141 = por %p139, %p140
      %p142 = scmp.ne.s32.totalorder %s130, %s131
      %p143 = scmp.eq.s32.totalorder %s23, 3
      %p144 = por %p142, %p143
      %p146 = scmp.ne.s32.totalorder %s131, %s145
      %p147 = scmp.eq.s32.totalorder %s23, 0
      %p148 = por %p146, %p147
      %s149 = ssub.s32 %s24, %s36
      %s150 = ssub.s32 %s25, %s32
      %s151 = sor.u32 %s149, %s150
      %p152 = scmp.eq.s32.totalorder %s151, 0
      %s154 = sadd.s32 %s153, 1
      %s155 = scalar_select %p152, %s153, %s154
      %p158 = pneg %p152
      %p159 = scmp.eq.s32.totalorder %s17, 3
      %p160 = por %p158, %p159
      %p161 = scmp.ne.s32.totalorder %s153, %s156
      %p162 = scmp.eq.s32.totalorder %s17, 0
      %p163 = por %p161, %p162
      %p164 = scmp.ne.s32.totalorder %s153, %s156
      %p165 = scmp.eq.s32.totalorder %s22, 3
      %p166 = por %p164, %p165
      %p167 = scmp.ne.s32.totalorder %s156, %s157
      %p168 = scmp.eq.s32.totalorder %s22, 0
      %p169 = por %p167, %p168
      %p170 = scmp.ne.s32.totalorder %s156, %s157
      %p171 = scmp.eq.s32.totalorder %s23, 3
      %p172 = por %p170, %p171
      %p174 = scmp.ne.s32.totalorder %s157, %s173
      %p175 = scmp.eq.s32.totalorder %s23, 0
      %p176 = por %p174, %p175
      %p177 = scmp.le.s32.totalorder 1, %s17
      %p178 = scmp.lt.s32.totalorder %s17, 5
      %p179 = pnand %p177, %p178
      %p180 = pneg %p179
      // Predicated region
      $region9: #{tpu_custom_call.1} parent=5 // pred_check
        _
      $region10: #{tpu_custom_call.1} parent=5 // pred_check_branch
        %182 = sbr.rel (%p179) target = $region12
      $region11: #{tpu_custom_call.1} parent=5 // pred_region
        %s183 = ssub.s32 %s17, 1
        // Predicated region
        $region13: #{tpu_custom_call.1} parent=11 // pred_check
          %p184 = pneg %p78
        $region14: #{tpu_custom_call.1} parent=11 // pred_check_branch
          %186 = sbr.rel (%p184) target = $region16
        $region15: #{tpu_custom_call.1} parent=11 // pred_region
          _
        $region16: #{tpu_custom_call.1} parent=11 // pred_fallthru
          _
        // Predicated region
        $region17: #{tpu_custom_call.1} parent=11 // pred_check
          %p187 = pneg %p99
        $region18: #{tpu_custom_call.1} parent=11 // pred_check_branch
          %189 = sbr.rel (%p187) target = $region20
        $region19: #{tpu_custom_call.1} parent=11 // pred_region
          _
        $region20: #{tpu_custom_call.1} parent=11 // pred_fallthru
          _
        // Predicated region
        $region21: #{tpu_custom_call.1} parent=11 // pred_check
          %p190 = pneg %p120
        $region22: #{tpu_custom_call.1} parent=11 // pred_check_branch
          %192 = sbr.rel (%p190) target = $region24
        $region23: #{tpu_custom_call.1} parent=11 // pred_region
          _
        $region24: #{tpu_custom_call.1} parent=11 // pred_fallthru
          _
        // Predicated region
        $region25: #{tpu_custom_call.1} parent=11 // pred_check
          %p193 = pneg %p141
        $region26: #{tpu_custom_call.1} parent=11 // pred_check_branch
          %195 = sbr.rel (%p193) target = $region28
        $region27: #{tpu_custom_call.1} parent=11 // pred_region
          _
        $region28: #{tpu_custom_call.1} parent=11 // pred_fallthru
          _
      $region12: #{tpu_custom_call.1} parent=5 // pred_fallthru
        _
      %p196 = scmp.lt.s32.totalorder %s17, 4
      // Predicated region
      $region29: #{tpu_custom_call.1} parent=5 // pred_check
        %p197 = pneg %p196
      $region30: #{tpu_custom_call.1} parent=5 // pred_check_branch
        %199 = sbr.rel (%p197) target = $region32
      $region31: #{tpu_custom_call.1} parent=5 // pred_region
        // Predicated region
        $region33: #{tpu_custom_call.1} parent=31 // pred_check
          %p200 = pneg %p51
        $region34: #{tpu_custom_call.1} parent=31 // pred_check_branch
          %202 = sbr.rel (%p200) target = $region36
        $region35: #{tpu_custom_call.1} parent=31 // pred_region
          %s203 = sand.u32 %s41, 1
          %s204 = scalar_lea.sflag [#allocation3], %s203
          %s205 = sand.u32 %s41, 1
          %s206 = smul.addr %s205, 32
          %s207 = scalar_lea.vmem [#allocation2], %s206
          %209 = vsyncadd %s204, 0
          %s210 = smul.addr %s24, 8
          %s211 = sadd.s32 %s25, %s210
          %s212 = smul.addr %s211, 8
          %s213 = scalar_lea.hbm %s0, %s212
          %s214 = sshll.u32 %s213, 4
          %s215 = int_to_ptr.hbm [resolvable:$true] %s214
          %s216 = sshll.u32 %s207, 4
          %s217 = int_to_ptr.vmem [resolvable:$true] %s216
          %222 = dma.hbm_to_vmem [thread:$0]  %s215, 512, %s217, %s204, 256, 128, 8
        $region36: #{tpu_custom_call.1} parent=31 // pred_fallthru
          _
      $region32: #{tpu_custom_call.1} parent=5 // pred_fallthru
        _
      %p223 = scmp.le.s32.totalorder 1, %s17
      %p224 = scmp.lt.s32.totalorder %s17, 5
      %p225 = pnand %p223, %p224
      %p226 = pneg %p225
      // Predicated region
      $region37: #{tpu_custom_call.1} parent=5 // pred_check
        _
      $region38: #{tpu_custom_call.1} parent=5 // pred_check_branch
        %228 = sbr.rel (%p225) target = $region40
      $region39: #{tpu_custom_call.1} parent=5 // pred_region
        %s229 = ssub.s32 %s17, 1
        %s230 = sand.u32 %s44, 1
        %s231 = scalar_lea.sflag [#allocation3], %s230
        %s232 = sand.u32 %s44, 1
        %s233 = smul.addr %s232, 32
        %s234 = scalar_lea.vmem [#allocation2], %s233
        // Predicated region
        $region41: #{tpu_custom_call.1} parent=39 // pred_check
          %p235 = pneg %p57
        $region42: #{tpu_custom_call.1} parent=39 // pred_check_branch
          %237 = sbr.rel (%p235) target = $region44
        $region43: #{tpu_custom_call.1} parent=39 // pred_region
          %239 = dma.done %s231, 512
        $region44: #{tpu_custom_call.1} parent=39 // pred_fallthru
          _
        %s240 = sand.u32 %s44, 1
        %s241 = scalar_lea.sflag [#allocation3], %s240
        %s242 = sand.u32 %s44, 1
        %s243 = smul.addr %s242, 32
        %s244 = scalar_lea.vmem [#allocation2], %s243
        %p245 = pneg %p57
        %p246 = pneg %p54
        %p247 = pneg %p78
        %p248 = pneg %p75
        %p249 = pneg %p99
        %p250 = pneg %p96
        %p251 = pneg %p120
        %p252 = pneg %p117
        %p253 = pneg %p141
        %p254 = pneg %p138
        %p255 = pneg %p169
        %p256 = pneg %p166
        %s257 = sand.u32 %s156, 1
        %s258 = scalar_lea.sflag [#allocation4], %s257
        %s259 = sand.u32 %s156, 1
        %s260 = smul.addr %s259, 32
        %s261 = scalar_lea.vmem [#allocation5], %s260
        %v262 = vld [vmem:[%s234] sm:$0xff]
        %v263 = vld [vmem:[%s234 + $0x8] sm:$0xff]
        %v264 = vld [vmem:[%s234 + $0x10] sm:$0xff]
        %v265 = vld [vmem:[%s234 + $0x18] sm:$0xff]
        %v266 = vld [vmem:[%s1] sm:$0x3]
        %v267 = vld [vmem:[%s2] sm:$0x3]
        %269 = vset.pattern.permute.xlu0 0
        %270 = vperm.xlu0 %269, %v267
        %v271 = vpop.permute.xlu0 %270
        %vm273 = vcmask 261120
        %v275 = vsel %vm273, %v266, 0
        %277 = vmatpush.msra.mxu0 0.0
        %278 = vmatpush.msra.mxu0 0.0
        %279 = vmatpush.msra.mxu0 0.0
        %280 = vmatpush.msra.mxu0 0.0
        %281 = vmatpush.msra.mxu0 0.0
        %282 = vmatpush.msra.mxu0 0.0
        %283 = vmatpush.msra.mxu0 0.0
        %284 = vmatpush.msra.mxu0 0.0
        %285 = vmatpush.msra.mxu0 0.0
        %286 = vmatpush.msra.mxu0 0.0
        %287 = vmatpush.msra.mxu0 0.0
        %288 = vmatpush.msra.mxu0 0.0
        %289 = vmatpush.msra.mxu0 %v265
        %290 = vmatpush.msra.mxu0 %v264
        %291 = vmatpush.msra.mxu0 %v263
        %292 = vmatpush.msra.mxu0 %v262
        %293 = vmatmul.f32.gmra.mxu0 %v275
        %v294 = vpop.f32.mrf.mxu0
        %v295 = vadd.f32 %v271, %v294
        %296 = vdwg.mxu0
        %v297 = vmax.f32 %v295, 0.0
        %v298 = vld [vmem:[%s3] sm:$0xff]
        %v299 = vld [vmem:[%s3 + $0x8] sm:$0xff]
        %v300 = vld [vmem:[%s3 + $0x10] sm:$0xff]
        %v301 = vld [vmem:[%s3 + $0x18] sm:$0xff]
        %v302 = vld [vmem:[%s4] sm:$0xff]
        %v303 = vld [vmem:[%s4 + $0x8] sm:$0xff]
        %v304 = vld [vmem:[%s4 + $0x10] sm:$0xff]
        %v305 = vld [vmem:[%s4 + $0x18] sm:$0xff]
        %307 = vset.pattern.permute.xlu0 0
        %308 = vperm.xlu0 %307, %v302
        %v309 = vpop.permute.xlu0 %308
        %312 = vset.pattern.permute.xlu0 0
        %313 = vperm.xlu0 %312, %v303
        %v314 = vpop.permute.xlu0 %313
        %317 = vset.pattern.permute.xlu0 0
        %318 = vperm.xlu0 %317, %v304
        %v319 = vpop.permute.xlu0 %318
        %322 = vset.pattern.permute.xlu0 0
        %323 = vperm.xlu0 %322, %v305
        %v324 = vpop.permute.xlu0 %323
        %vm326 = vcmask 15360
        %v328 = vsel %vm326, %v298, 0
        %v331 = vsel %vm326, %v299, 0
        %v334 = vsel %vm326, %v300, 0
        %v337 = vsel %vm326, %v301, 0
        %vm339 = vcmask 1041408
        %v341 = vsel %vm339, %v297, 0
        %343 = vmatpush.msra.mxu0 0.0
        %344 = vmatpush.msra.mxu0 0.0
        %345 = vmatpush.msra.mxu0 0.0
        %346 = vmatpush.msra.mxu0 0.0
        %347 = vmatpush.msra.mxu0 0.0
        %348 = vmatpush.msra.mxu0 0.0
        %349 = vmatpush.msra.mxu0 0.0
        %350 = vmatpush.msra.mxu0 0.0
        %351 = vmatpush.msra.mxu0 0.0
        %352 = vmatpush.msra.mxu0 0.0
        %353 = vmatpush.msra.mxu0 0.0
        %354 = vmatpush.msra.mxu0 0.0
        %355 = vmatpush.msra.mxu0 0.0
        %356 = vmatpush.msra.mxu0 0.0
        %357 = vmatpush.msra.mxu0 0.0
        %358 = vmatpush.msra.mxu0 %v341
        %359 = vmatmul.f32.gmra.mxu0 %v328
        %v360 = vpop.f32.mrf.mxu0
        %v361 = vadd.f32 %v309, %v360
        %362 = vmatmul.f32.gmra.mxu0 %v331
        %v363 = vpop.f32.mrf.mxu0
        %v364 = vadd.f32 %v314, %v363
        %365 = vmatmul.f32.gmra.mxu0 %v334
        %v366 = vpop.f32.mrf.mxu0
        %v367 = vadd.f32 %v319, %v366
        %368 = vmatmul.f32.gmra.mxu0 %v337
        %v369 = vpop.f32.mrf.mxu0
        %v370 = vadd.f32 %v324, %v369
        %371 = vdwg.mxu0
        %v372 = vsub.f32 0.0, %v361
        %v373 = vsub.f32 0.0, %v364
        %v374 = vsub.f32 0.0, %v367
        %v375 = vsub.f32 0.0, %v370
        %v376 = vmul.f32 %v372, 1.442695
        %v377 = vpow.pop %v376
        %v378 = vmul.f32 %v373, 1.442695
        %v379 = vpow.pop %v378
        %v380 = vmul.f32 %v374, 1.442695
        %v381 = vpow.pop %v380
        %v382 = vmul.f32 %v375, 1.442695
        %v383 = vpow.pop %v382
        %v384 = vadd.f32 %v377, 1.0
        %v385 = vadd.f32 %v379, 1.0
        %v386 = vadd.f32 %v381, 1.0
        %v387 = vadd.f32 %v383, 1.0
        %v388 = vrcp.pop %v384
        %v389 = vrcp.pop %v385
        %v390 = vrcp.pop %v386
        %v391 = vrcp.pop %v387
        %v392 = vmul.f32 %v262, %v388
        %v393 = vmul.f32 %v263, %v389
        %v394 = vmul.f32 %v264, %v390
        %v395 = vmul.f32 %v265, %v391
        %396 = vst [vmem:[%s261] sm:$0xff] %v392
        %397 = vst [vmem:[%s261 + $0x8] sm:$0xff] %v393
        %398 = vst [vmem:[%s261 + $0x10] sm:$0xff] %v394
        %399 = vst [vmem:[%s261 + $0x18] sm:$0xff] %v395
        %s400 = sand.u32 %s156, 1
        %s401 = scalar_lea.sflag [#allocation4], %s400
        %s402 = sand.u32 %s156, 1
        %s403 = smul.addr %s402, 32
        %s404 = scalar_lea.vmem [#allocation5], %s403
        // Predicated region
        $region45: #{tpu_custom_call.1} parent=39 // pred_check
          %p405 = pneg %p166
        $region46: #{tpu_custom_call.1} parent=39 // pred_check_branch
          %407 = sbr.rel (%p405) target = $region48
        $region47: #{tpu_custom_call.1} parent=39 // pred_region
          %409 = vsyncadd %s401, 0
          %s410 = smul.addr %s26, 8
          %s411 = sadd.s32 %s27, %s410
          %s412 = smul.addr %s411, 8
          %s413 = scalar_lea.hbm %s5, %s412
          %s414 = sshll.u32 %s404, 4
          %s415 = int_to_ptr.vmem [resolvable:$true] %s414
          %s416 = sshll.u32 %s413, 4
          %s417 = int_to_ptr.hbm [resolvable:$true] %s416
          %422 = dma.vmem_to_hbm [thread:$0]  %s415, 512, %s417, %s401, 128, 256, 8
        $region48: #{tpu_custom_call.1} parent=39 // pred_fallthru
          _
      $region40: #{tpu_custom_call.1} parent=5 // pred_fallthru
        _
      %p423 = scmp.le.s32.totalorder 2, %s17
      // Predicated region
      $region49: #{tpu_custom_call.1} parent=5 // pred_check
        %p424 = pneg %p423
      $region50: #{tpu_custom_call.1} parent=5 // pred_check_branch
        %426 = sbr.rel (%p424) target = $region52
      $region51: #{tpu_custom_call.1} parent=5 // pred_region
        %s427 = ssub.s32 %s17, 2
        // Predicated region
        $region53: #{tpu_custom_call.1} parent=51 // pred_check
          %p428 = pneg %p172
        $region54: #{tpu_custom_call.1} parent=51 // pred_check_branch
          %430 = sbr.rel (%p428) target = $region56
        $region55: #{tpu_custom_call.1} parent=51 // pred_region
          %s431 = sand.u32 %s157, 1
          %s432 = scalar_lea.sflag [#allocation4], %s431
          %s433 = sand.u32 %s157, 1
          %s434 = smul.addr %s433, 32
          %s435 = scalar_lea.vmem [#allocation5], %s434
          %437 = dma.done %s432, 512
        $region56: #{tpu_custom_call.1} parent=51 // pred_fallthru
          _
      $region52: #{tpu_custom_call.1} parent=5 // pred_fallthru
        _
    $region6: #{tpu_custom_call.1} parent=1 // loop_footer
      %s21 = sadd.s32 1, %s17
    $region7: #{tpu_custom_call.1} parent=1 // loop_footer_branch
      %16 = sbr.rel target = $region3
    $region8: #{tpu_custom_call.1} parent=1 // loop_exit
      _
    %438 = vsyncpa [#allocation3], 1
    %s439 = scalar_lea.sflag [#allocation3], 1
    %440 = vsyncpa %s439, 1
    %441 = vsyncpa [#allocation4], 1
    %s442 = scalar_lea.sflag [#allocation4], 1
    %443 = vsyncpa %s442, 1

</llo_original>
